<compile_context>
chip_gen: v7x
topology: tpu7x:2x2x1
jax: 0.10.0
libtpu: 0.0.40
codegen_flags: <defaults>
</compile_context>

<pallas_src>
import functools

import jax
import jax.numpy as jnp
from jax.experimental import pallas as pl
from jax.experimental.pallas import tpu as pltpu

HIDDEN_LAYERS = 64   # matches `hidden_layers = 64` in the reference script
INPUT_DIM = 30       # Wisconsin (diagnostic) feature count
OUTPUT_DIM = 2       # num_classes in the Wisconsin dataset


def _round_up(n, m):
    return ((n + m - 1) // m) * m


def _mlp_kernel(xt_ref, w1t_ref, b1_ref, w2t_ref, b2_ref, ot_ref):
    # xt:  [D_in, TB]  f32  (batch on the lane axis -> dense full-lane loads)
    # w1t: [H, D_in]   f32  (VMEM-resident across grid steps)
    # b1:  [H, 1]      f32
    # w2t: [D_out, H]  f32
    # b2:  [D_out, 1]  f32
    # ot:  [D_out, TB] f32  (batch on the lane axis -> unmasked full-lane stores)
    h = jnp.dot(w1t_ref[...], xt_ref[...], preferred_element_type=jnp.float32)
    h = jax.nn.sigmoid(h + b1_ref[...])            # bias + sigmoid in f32 (EUP)
    out = jnp.dot(w2t_ref[...], h, preferred_element_type=jnp.float32)
    ot_ref[...] = out + b2_ref[...]


@functools.partial(jax.jit, static_argnames=("block_b",))
def network_forward(x, w1, b1, w2, b2, block_b=1024):
    """Fused forward pass of `Network` as one Pallas call.

    x:  [B, D_in] f32,  w1: [D_in, H],  b1: [H],  w2: [H, D_out],  b2: [D_out]
    Returns [B, D_out] f32.
    """
    B, d_in = x.shape
    h_dim = w1.shape[1]
    d_out = w2.shape[1]

    # Batch tile: a multiple of 128 lanes, capped at block_b; pad B to a whole
    # number of tiles (padded columns are sliced off at the end).
    tb = min(_round_up(block_b, 128), _round_up(B, 128))
    b_pad = _round_up(B, tb)

    # Transposed, lane-dense layout; everything in f32.
    xt = jnp.zeros((d_in, b_pad), jnp.float32).at[:, :B].set(
        x.T.astype(jnp.float32))
    w1t = w1.T.astype(jnp.float32)                     # [H, D_in]
    w2t = w2.T.astype(jnp.float32)                     # [D_out, H]
    b1c = b1.reshape(h_dim, 1).astype(jnp.float32)     # [H, 1]
    b2c = b2.reshape(d_out, 1).astype(jnp.float32)     # [D_out, 1]

    grid = (b_pad // tb,)
    cost = pl.CostEstimate(
        flops=2 * b_pad * (d_in * h_dim + h_dim * d_out),
        transcendentals=b_pad * h_dim,
        bytes_accessed=4 * (xt.size + w1t.size + w2t.size
                            + b1c.size + b2c.size + d_out * b_pad),
    )

    out_t = pl.pallas_call(
        _mlp_kernel,
        out_shape=jax.ShapeDtypeStruct((d_out, b_pad), jnp.float32),
        grid=grid,
        in_specs=[
            pl.BlockSpec((d_in, tb), lambda i: (0, i)),      # x tiles stream/pipeline
            pl.BlockSpec((h_dim, d_in), lambda i: (0, 0)),   # weights stay resident
            pl.BlockSpec((h_dim, 1), lambda i: (0, 0)),
            pl.BlockSpec((d_out, h_dim), lambda i: (0, 0)),
            pl.BlockSpec((d_out, 1), lambda i: (0, 0)),
        ],
        out_specs=pl.BlockSpec((d_out, tb), lambda i: (0, i)),
        compiler_params=pltpu.CompilerParams(
            dimension_semantics=("parallel",),               # megacore on v7x
        ),
        cost_estimate=cost,
    )(xt, w1t, b1c, w2t, b2c)

    return out_t[:, :B].T


def init_params(key):
    """Deterministic init mimicking nn.Linear defaults (uniform +/- 1/sqrt(fan_in))."""
    k1, k2, k3, k4 = jax.random.split(key, 4)
    bound1 = 1.0 / jnp.sqrt(jnp.float32(INPUT_DIM))
    bound2 = 1.0 / jnp.sqrt(jnp.float32(HIDDEN_LAYERS))
    w1 = jax.random.uniform(k1, (INPUT_DIM, HIDDEN_LAYERS), jnp.float32, -bound1, bound1)
    b1 = jax.random.uniform(k2, (HIDDEN_LAYERS,), jnp.float32, -bound1, bound1)
    w2 = jax.random.uniform(k3, (HIDDEN_LAYERS, OUTPUT_DIM), jnp.float32, -bound2, bound2)
    b2 = jax.random.uniform(k4, (OUTPUT_DIM,), jnp.float32, -bound2, bound2)
    return w1, b1, w2, b2


if __name__ == "__main__":
    key = jax.random.PRNGKey(0)
    k_x, k_p = jax.random.split(key)

    B = 8
    x = jax.random.uniform(k_x, (B, INPUT_DIM), jnp.float32)  # min-max scaled features
    w1, b1, w2, b2 = init_params(k_p)

    out = network_forward(x, w1, b1, w2, b2)
    out = jax.block_until_ready(out)
    assert out.shape == (B, OUTPUT_DIM)

    # Pure-f32 reference matching the PyTorch forward exactly.
    ref_f32 = jax.nn.sigmoid(x @ w1 + b1) @ w2 + b2
    assert jnp.allclose(out, ref_f32, atol=1e-4, rtol=1e-4)

    # Exercise the multi-step grid + batch-padding path.
    B2 = 300
    x2 = jax.random.uniform(jax.random.PRNGKey(1), (B2, INPUT_DIM), jnp.float32)
    out2 = jax.block_until_ready(network_forward(x2, w1, b1, w2, b2, block_b=128))
    ref2 = jax.nn.sigmoid(x2 @ w1 + b1) @ w2 + b2
    assert out2.shape == (B2, OUTPUT_DIM)
    assert jnp.allclose(out2, ref2, atol=1e-4, rtol=1e-4)

    print("KERNEL_OK")
</pallas_src>

<mosaic_0001>
module attributes {stable_mosaic.version = 11 : i64} {
  func.func @_mlp_kernel(%arg0: i32, %arg1: memref<30x128xf32, #tpu.memory_space<vmem>>, %arg2: memref<64x30xf32, #tpu.memory_space<vmem>>, %arg3: memref<64x1xf32, #tpu.memory_space<vmem>>, %arg4: memref<2x64xf32, #tpu.memory_space<vmem>>, %arg5: memref<2x1xf32, #tpu.memory_space<vmem>>, %arg6: memref<2x128xf32, #tpu.memory_space<vmem>>) attributes {dimension_semantics = [#tpu.dimension_semantics<parallel>], iteration_bounds = array<i64: 1>, scalar_prefetch = 0 : i64, scratch_operands = 0 : i64, tpu.core_type = #tpu.core_type<tc>, window_params = [{transform_indices = @transform_0, window_bounds = array<i64: 30, 128>}, {pipeline_mode = #tpu.pipeline_mode<synchronous>, transform_indices = @transform_1, window_bounds = array<i64: 64, 30>}, {pipeline_mode = #tpu.pipeline_mode<synchronous>, transform_indices = @transform_2, window_bounds = array<i64: 64, 1>}, {pipeline_mode = #tpu.pipeline_mode<synchronous>, transform_indices = @transform_3, window_bounds = array<i64: 2, 64>}, {pipeline_mode = #tpu.pipeline_mode<synchronous>, transform_indices = @transform_4, window_bounds = array<i64: 2, 1>}, {transform_indices = @transform_5, window_bounds = array<i64: 2, 128>}]} {
    %c0 = arith.constant 0 : index
    %c0_0 = arith.constant 0 : index
    %0 = vector.load %arg2[%c0, %c0_0] : memref<64x30xf32, #tpu.memory_space<vmem>>, vector<64x30xf32>
    %c0_1 = arith.constant 0 : index
    %c0_2 = arith.constant 0 : index
    %1 = vector.load %arg1[%c0_1, %c0_2] : memref<30x128xf32, #tpu.memory_space<vmem>>, vector<30x128xf32>
    %cst = arith.constant dense<0.000000e+00> : vector<64x128xf32>
    %2 = tpu.matmul %0, %1, %cst {dimension_numbers = #tpu.dot_dimension_numbers<[1], [0], [0], [1], [0, 0, 1, 1], [], []>} : vector<64x30xf32>, vector<30x128xf32>, vector<64x128xf32> -> vector<64x128xf32>
    %c0_3 = arith.constant 0 : index
    %c0_4 = arith.constant 0 : index
    %3 = vector.load %arg3[%c0_3, %c0_4] : memref<64x1xf32, #tpu.memory_space<vmem>>, vector<64x1xf32>
    %4 = vector.broadcast %3 : vector<64x1xf32> to vector<64x128xf32>
    %5 = arith.addf %2, %4 : vector<64x128xf32>
    %6 = arith.negf %5 : vector<64x128xf32>
    %7 = math.exp %6 : vector<64x128xf32>
    %cst_5 = arith.constant 1.000000e+00 : f32
    %8 = vector.broadcast %cst_5 : f32 to vector<64x128xf32>
    %9 = arith.addf %8, %7 : vector<64x128xf32>
    %10 = arith.divf %8, %9 : vector<64x128xf32>
    %c0_6 = arith.constant 0 : index
    %c0_7 = arith.constant 0 : index
    %11 = vector.load %arg4[%c0_6, %c0_7] : memref<2x64xf32, #tpu.memory_space<vmem>>, vector<2x64xf32>
    %cst_8 = arith.constant dense<0.000000e+00> : vector<2x128xf32>
    %12 = tpu.matmul %11, %10, %cst_8 {dimension_numbers = #tpu.dot_dimension_numbers<[1], [0], [0], [1], [0, 0, 1, 1], [], []>} : vector<2x64xf32>, vector<64x128xf32>, vector<2x128xf32> -> vector<2x128xf32>
    %c0_9 = arith.constant 0 : index
    %c0_10 = arith.constant 0 : index
    %13 = vector.load %arg5[%c0_9, %c0_10] : memref<2x1xf32, #tpu.memory_space<vmem>>, vector<2x1xf32>
    %14 = vector.broadcast %13 : vector<2x1xf32> to vector<2x128xf32>
    %15 = arith.addf %12, %14 : vector<2x128xf32>
    %c0_11 = arith.constant 0 : index
    %c0_12 = arith.constant 0 : index
    %16 = vector.load %arg6[%c0_11, %c0_12] : memref<2x128xf32, #tpu.memory_space<vmem>>, vector<2x128xf32>
    tpu.vector_store %arg6[%c0_11, %c0_12], %15 {strides = array<i32>} : memref<2x128xf32, #tpu.memory_space<vmem>>, vector<2x128xf32>,
    return
  }
  func.func @transform_0(%arg0: i32) -> (i32, i32) {
    %c0_i32 = arith.constant 0 : i32
    %c0_i32_0 = arith.constant 0 : i32
    return %c0_i32, %arg0 : i32, i32
  }
  func.func @transform_1(%arg0: i32) -> (i32, i32) {
    %c0_i32 = arith.constant 0 : i32
    %c0_i32_0 = arith.constant 0 : i32
    %c0_i32_1 = arith.constant 0 : i32
    return %c0_i32, %c0_i32_0 : i32, i32
  }
  func.func @transform_2(%arg0: i32) -> (i32, i32) {
    %c0_i32 = arith.constant 0 : i32
    %c0_i32_0 = arith.constant 0 : i32
    %c0_i32_1 = arith.constant 0 : i32
    return %c0_i32, %c0_i32_0 : i32, i32
  }
  func.func @transform_3(%arg0: i32) -> (i32, i32) {
    %c0_i32 = arith.constant 0 : i32
    %c0_i32_0 = arith.constant 0 : i32
    %c0_i32_1 = arith.constant 0 : i32
    return %c0_i32, %c0_i32_0 : i32, i32
  }
  func.func @transform_4(%arg0: i32) -> (i32, i32) {
    %c0_i32 = arith.constant 0 : i32
    %c0_i32_0 = arith.constant 0 : i32
    %c0_i32_1 = arith.constant 0 : i32
    return %c0_i32, %c0_i32_0 : i32, i32
  }
  func.func @transform_5(%arg0: i32) -> (i32, i32) {
    %c0_i32 = arith.constant 0 : i32
    %c0_i32_0 = arith.constant 0 : i32
    return %c0_i32, %arg0 : i32, i32
  }
}

</mosaic_0001>

<llo_original>
// kernel: network_forward.1
$region0: #{network_forward.1}
  #allocation0 [shape = 'u32[]', space=smem, size = 0x4, offset = 0x4, fixed_abs, tag = 'smem constant byte address 0x4 - core index']
  #allocation1 [shape = 'u32[144,128]{1,0:T(1,128)}', space=vmem, size = 0x12000, scoped, tag = 'internal scratch']
  %s0 = inlined_call_operand.vmem [shape: f32[30,128], index: 0, kind: input, shape index: {}]
  %s1 = inlined_call_operand.vmem [shape: f32[64,30], index: 1, kind: input, shape index: {}]
  %s2 = inlined_call_operand.vmem [shape: f32[64,1], index: 2, kind: input, shape index: {}]
  %s3 = inlined_call_operand.vmem [shape: f32[2,64], index: 3, kind: input, shape index: {}]
  %s4 = inlined_call_operand.vmem [shape: f32[2,1], index: 4, kind: input, shape index: {}]
  %s5 = inlined_call_operand.vmem [shape: f32[2,128], index: 5, kind: output, shape index: {}]
  %s6 = sld [smem:[#allocation0]]
  $region30: #{network_forward.1} parent=0
    _
  %s8 = ssub.s32 1, %s6
  %s9 = scalar_select 0, %s8, %s6
  // Predicated region
  $region2: #{network_forward.1} parent=0 // pred_check
    _
  $region3: #{network_forward.1} parent=0 // pred_check_branch
    %11 = sbr.rel (0) target = $region5
  $region4: #{network_forward.1} parent=0 // pred_region
    _
  $region5: #{network_forward.1} parent=0 // pred_fallthru
    _
  // Predicated region
  $region6: #{network_forward.1} parent=0 // pred_check
    _
  $region7: #{network_forward.1} parent=0 // pred_check_branch
    %13 = sbr.rel (0) target = $region9
  $region8: #{network_forward.1} parent=0 // pred_region
    _
  $region9: #{network_forward.1} parent=0 // pred_fallthru
    _
  // Predicated region
  $region10: #{network_forward.1} parent=0 // pred_check
    _
  $region11: #{network_forward.1} parent=0 // pred_check_branch
    %15 = sbr.rel (0) target = $region13
  $region12: #{network_forward.1} parent=0 // pred_region
    _
  $region13: #{network_forward.1} parent=0 // pred_fallthru
    _
  // Predicated region
  $region14: #{network_forward.1} parent=0 // pred_check
    _
  $region15: #{network_forward.1} parent=0 // pred_check_branch
    %17 = sbr.rel (0) target = $region17
  $region16: #{network_forward.1} parent=0 // pred_region
    _
  $region17: #{network_forward.1} parent=0 // pred_fallthru
    _
  // Predicated region
  $region18: #{network_forward.1} parent=0 // pred_check
    _
  $region19: #{network_forward.1} parent=0 // pred_check_branch
    %19 = sbr.rel (0) target = $region21
  $region20: #{network_forward.1} parent=0 // pred_region
    _
  $region21: #{network_forward.1} parent=0 // pred_fallthru
    _
  %v20 = vld [vmem:[%s1] sm:$0xff]
  %v21 = vld [vmem:[%s1 + $0x8] sm:$0xff]
  %v22 = vld [vmem:[%s1 + $0x10] sm:$0xff]
  %v23 = vld [vmem:[%s1 + $0x18] sm:$0xff]
  %v24 = vld [vmem:[%s1 + $0x20] sm:$0xff]
  %v25 = vld [vmem:[%s1 + $0x28] sm:$0xff]
  %v26 = vld [vmem:[%s1 + $0x30] sm:$0xff]
  %v27 = vld [vmem:[%s1 + $0x38] sm:$0xff]
  %v28 = vld [vmem:[%s0] sm:$0xff]
  %v29 = vld [vmem:[%s0 + $0x8] sm:$0xff]
  %v30 = vld [vmem:[%s0 + $0x10] sm:$0xff]
  %v31 = vld [vmem:[%s0 + $0x18] sm:$0x3f]
  %v32 = vld [vmem:[%s2] sm:$0xff]
  %v33 = vld [vmem:[%s2 + $0x8] sm:$0xff]
  %v34 = vld [vmem:[%s2 + $0x10] sm:$0xff]
  %v35 = vld [vmem:[%s2 + $0x18] sm:$0xff]
  %v36 = vld [vmem:[%s2 + $0x20] sm:$0xff]
  %v37 = vld [vmem:[%s2 + $0x28] sm:$0xff]
  %v38 = vld [vmem:[%s2 + $0x30] sm:$0xff]
  %v39 = vld [vmem:[%s2 + $0x38] sm:$0xff]
  %41 = vset.pattern.permute.xlu0 0
  %42 = vperm.xlu0 %41, %v32
  %v43 = vpop.permute.xlu0 %42
  %46 = vset.pattern.permute.xlu0 0
  %47 = vperm.xlu0 %46, %v33
  %v48 = vpop.permute.xlu0 %47
  %51 = vset.pattern.permute.xlu0 0
  %52 = vperm.xlu0 %51, %v34
  %v53 = vpop.permute.xlu0 %52
  %56 = vset.pattern.permute.xlu0 0
  %57 = vperm.xlu0 %56, %v35
  %v58 = vpop.permute.xlu0 %57
  %61 = vset.pattern.permute.xlu0 0
  %62 = vperm.xlu0 %61, %v36
  %v63 = vpop.permute.xlu0 %62
  %66 = vset.pattern.permute.xlu0 0
  %67 = vperm.xlu0 %66, %v37
  %v68 = vpop.permute.xlu0 %67
  %71 = vset.pattern.permute.xlu0 0
  %72 = vperm.xlu0 %71, %v38
  %v73 = vpop.permute.xlu0 %72
  %76 = vset.pattern.permute.xlu0 0
  %77 = vperm.xlu0 %76, %v39
  %v78 = vpop.permute.xlu0 %77
  %vm80 = vcmask 244736
  %v82 = vsel %vm80, %v20, 0
  %v85 = vsel %vm80, %v21, 0
  %v88 = vsel %vm80, %v22, 0
  %v91 = vsel %vm80, %v23, 0
  %v94 = vsel %vm80, %v24, 0
  %v97 = vsel %vm80, %v25, 0
  %v100 = vsel %vm80, %v26, 0
  %v103 = vsel %vm80, %v27, 0
  %vm105 = vcmask 1045504
  %v107 = vsel %vm105, %v31, 0
  %109 = vmatprep.subr.mxu0 0.0
  %110 = vmatpush1.msra.mxu0 %v28
  %111 = vmatprep.subr.mxu0 0.0
  %112 = vmatpush1.msra.mxu0 %v29
  %113 = vmatprep.subr.mxu0 0.0
  %114 = vmatpush1.msra.mxu0 %v30
  %115 = vmatprep.subr.mxu0 0.0
  %116 = vmatpush1.msra.mxu0 %v107
  %117 = vmatprep.subr.mxu0 0.0
  %118 = vmatpush1.msra.mxu0 0.0
  %119 = vmatprep.subr.mxu0 0.0
  %120 = vmatpush1.msra.mxu0 0.0
  %121 = vmatprep.subr.mxu0 0.0
  %122 = vmatpush1.msra.mxu0 0.0
  %123 = vmatprep.subr.mxu0 0.0
  %124 = vmatpush1.msra.mxu0 0.0
  %125 = vmatprep.subr.mxu0 0.0
  %126 = vmatpush1.msra.mxu0 0.0
  %127 = vmatprep.subr.mxu0 0.0
  %128 = vmatpush1.msra.mxu0 0.0
  %129 = vmatprep.subr.mxu0 0.0
  %130 = vmatpush1.msra.mxu0 0.0
  %131 = vmatprep.subr.mxu0 0.0
  %132 = vmatpush1.msra.mxu0 0.0
  %133 = vmatprep.subr.mxu0 0.0
  %134 = vmatpush1.msra.mxu0 0.0
  %135 = vmatprep.subr.mxu0 0.0
  %136 = vmatpush1.msra.mxu0 0.0
  %137 = vmatprep.subr.mxu0 0.0
  %138 = vmatpush1.msra.mxu0 0.0
  %139 = vmatprep.subr.mxu0 0.0
  %140 = vmatpush1.msra.mxu0 0.0
  %141 = vmatprep.subr.mxu0 0.0
  %142 = vmatpush1.msra.mxu0 0.0
  %143 = vmatprep.subr.mxu0 0.0
  %144 = vmatpush1.msra.mxu0 0.0
  %145 = vmatprep.subr.mxu0 0.0
  %146 = vmatpush1.msra.mxu0 0.0
  %147 = vmatprep.subr.mxu0 0.0
  %148 = vmatpush1.msra.mxu0 0.0
  %149 = vmatprep.subr.mxu0 0.0
  %150 = vmatpush1.msra.mxu0 0.0
  %151 = vmatprep.subr.mxu0 0.0
  %152 = vmatpush1.msra.mxu0 0.0
  %153 = vmatprep.subr.mxu0 0.0
  %154 = vmatpush1.msra.mxu0 0.0
  %155 = vmatprep.subr.mxu0 0.0
  %156 = vmatpush1.msra.mxu0 0.0
  %157 = vmatprep.subr.mxu0 0.0
  %158 = vmatpush1.msra.mxu0 0.0
  %159 = vmatprep.subr.mxu0 0.0
  %160 = vmatpush1.msra.mxu0 0.0
  %161 = vmatprep.subr.mxu0 0.0
  %162 = vmatpush1.msra.mxu0 0.0
  %163 = vmatprep.subr.mxu0 0.0
  %164 = vmatpush1.msra.mxu0 0.0
  %165 = vmatprep.subr.mxu0 0.0
  %166 = vmatpush1.msra.mxu0 0.0
  %167 = vmatprep.subr.mxu0 0.0
  %168 = vmatpush1.msra.mxu0 0.0
  %169 = vmatprep.subr.mxu0 0.0
  %170 = vmatpush1.msra.mxu0 0.0
  %171 = vmatprep.subr.mxu0 0.0
  %172 = vmatpush1.msra.mxu0 0.0
  %173 = vmatprep.mubr.f32.mxu0 0.0
  %174 = vmatmul.mubr.f32.gmra.mrb[0].mxu0 %v82
  %v175 = vpop.f32.mrb[0].mxu0
  %v176 = vadd.f32 %v43, %v175
  %v177 = vpop.f32.mrb[0].mxu0
  %178 = vmatprep.mubr.f32.mxu0 0.0
  %179 = vmatmul.mubr.f32.gmra.mrb[0].mxu0 %v85
  %v180 = vpop.f32.mrb[0].mxu0
  %v181 = vadd.f32 %v48, %v180
  %v182 = vpop.f32.mrb[0].mxu0
  %183 = vmatprep.mubr.f32.mxu0 0.0
  %184 = vmatmul.mubr.f32.gmra.mrb[0].mxu0 %v88
  %v185 = vpop.f32.mrb[0].mxu0
  %v186 = vadd.f32 %v53, %v185
  %v187 = vpop.f32.mrb[0].mxu0
  %188 = vmatprep.mubr.f32.mxu0 0.0
  %189 = vmatmul.mubr.f32.gmra.mrb[0].mxu0 %v91
  %v190 = vpop.f32.mrb[0].mxu0
  %v191 = vadd.f32 %v58, %v190
  %v192 = vpop.f32.mrb[0].mxu0
  %193 = vmatprep.mubr.f32.mxu0 0.0
  %194 = vmatmul.mubr.f32.gmra.mrb[0].mxu0 %v94
  %v195 = vpop.f32.mrb[0].mxu0
  %v196 = vadd.f32 %v63, %v195
  %v197 = vpop.f32.mrb[0].mxu0
  %198 = vmatprep.mubr.f32.mxu0 0.0
  %199 = vmatmul.mubr.f32.gmra.mrb[0].mxu0 %v97
  %v200 = vpop.f32.mrb[0].mxu0
  %v201 = vadd.f32 %v68, %v200
  %v202 = vpop.f32.mrb[0].mxu0
  %203 = vmatprep.mubr.f32.mxu0 0.0
  %204 = vmatmul.mubr.f32.gmra.mrb[0].mxu0 %v100
  %v205 = vpop.f32.mrb[0].mxu0
  %v206 = vadd.f32 %v73, %v205
  %v207 = vpop.f32.mrb[0].mxu0
  %208 = vmatprep.mubr.f32.mxu0 0.0
  %209 = vmatmul.mubr.f32.gmra.mrb[0].mxu0 %v103
  %v210 = vpop.f32.mrb[0].mxu0
  %v211 = vadd.f32 %v78, %v210
  %v212 = vpop.f32.mrb[0].mxu0
  %213 = vdwg.mxu0
  %v214 = vxor.u32 %v176, 2147483648
  %v215 = vxor.u32 %v181, 2147483648
  %v216 = vxor.u32 %v186, 2147483648
  %v217 = vxor.u32 %v191, 2147483648
  %v218 = vxor.u32 %v196, 2147483648
  %v219 = vxor.u32 %v201, 2147483648
  %v220 = vxor.u32 %v206, 2147483648
  %v221 = vxor.u32 %v211, 2147483648
  %v222 = vmul.f32 %v214, 1.442695
  %v223 = vpow.pop %v222
  %v224 = vmul.f32 %v215, 1.442695
  %v225 = vpow.pop %v224
  %v226 = vmul.f32 %v216, 1.442695
  %v227 = vpow.pop %v226
  %v228 = vmul.f32 %v217, 1.442695
  %v229 = vpow.pop %v228
  %v230 = vmul.f32 %v218, 1.442695
  %v231 = vpow.pop %v230
  %v232 = vmul.f32 %v219, 1.442695
  %v233 = vpow.pop %v232
  %v234 = vmul.f32 %v220, 1.442695
  %v235 = vpow.pop %v234
  %v236 = vmul.f32 %v221, 1.442695
  %v237 = vpow.pop %v236
  %v238 = vadd.f32 %v223, 1.0
  %v239 = vadd.f32 %v225, 1.0
  %v240 = vadd.f32 %v227, 1.0
  %v241 = vadd.f32 %v229, 1.0
  %v242 = vadd.f32 %v231, 1.0
  %v243 = vadd.f32 %v233, 1.0
  %v244 = vadd.f32 %v235, 1.0
  %v245 = vadd.f32 %v237, 1.0
  %v246 = vrcp.pop %v238
  %v247 = vmul.f32 1.0, %v246
  %v248 = vrcp.pop %v239
  %v249 = vmul.f32 1.0, %v248
  %v250 = vrcp.pop %v240
  %v251 = vmul.f32 1.0, %v250
  %v252 = vrcp.pop %v241
  %v253 = vmul.f32 1.0, %v252
  %v254 = vrcp.pop %v242
  %v255 = vmul.f32 1.0, %v254
  %v256 = vrcp.pop %v243
  %v257 = vmul.f32 1.0, %v256
  %v258 = vrcp.pop %v244
  %v259 = vmul.f32 1.0, %v258
  %v260 = vrcp.pop %v245
  %v261 = vmul.f32 1.0, %v260
  %v262 = vld [vmem:[%s3] sm:$0x3]
  %v263 = vld [vmem:[%s4] sm:$0x3]
  %265 = vset.pattern.permute.xlu0 0
  %266 = vperm.xlu0 %265, %v263
  %v267 = vpop.permute.xlu0 %266
  %vm269 = vcmask 523264
  %v271 = vsel %vm269, %v262, 0
  %273 = vmatprep.subr.mxu0 0.0
  %274 = vmatpush1.msra.mxu0 %v247
  %275 = vmatprep.subr.mxu0 0.0
  %276 = vmatpush1.msra.mxu0 %v249
  %277 = vmatprep.subr.mxu0 0.0
  %278 = vmatpush1.msra.mxu0 %v251
  %279 = vmatprep.subr.mxu0 0.0
  %280 = vmatpush1.msra.mxu0 %v253
  %281 = vmatprep.subr.mxu0 0.0
  %282 = vmatpush1.msra.mxu0 %v255
  %283 = vmatprep.subr.mxu0 0.0
  %284 = vmatpush1.msra.mxu0 %v257
  %285 = vmatprep.subr.mxu0 0.0
  %286 = vmatpush1.msra.mxu0 %v259
  %287 = vmatprep.subr.mxu0 0.0
  %288 = vmatpush1.msra.mxu0 %v261
  %289 = vmatprep.subr.mxu0 0.0
  %290 = vmatpush1.msra.mxu0 0.0
  %291 = vmatprep.subr.mxu0 0.0
  %292 = vmatpush1.msra.mxu0 0.0
  %293 = vmatprep.subr.mxu0 0.0
  %294 = vmatpush1.msra.mxu0 0.0
  %295 = vmatprep.subr.mxu0 0.0
  %296 = vmatpush1.msra.mxu0 0.0
  %297 = vmatprep.subr.mxu0 0.0
  %298 = vmatpush1.msra.mxu0 0.0
  %299 = vmatprep.subr.mxu0 0.0
  %300 = vmatpush1.msra.mxu0 0.0
  %301 = vmatprep.subr.mxu0 0.0
  %302 = vmatpush1.msra.mxu0 0.0
  %303 = vmatprep.subr.mxu0 0.0
  %304 = vmatpush1.msra.mxu0 0.0
  %305 = vmatprep.subr.mxu0 0.0
  %306 = vmatpush1.msra.mxu0 0.0
  %307 = vmatprep.subr.mxu0 0.0
  %308 = vmatpush1.msra.mxu0 0.0
  %309 = vmatprep.subr.mxu0 0.0
  %310 = vmatpush1.msra.mxu0 0.0
  %311 = vmatprep.subr.mxu0 0.0
  %312 = vmatpush1.msra.mxu0 0.0
  %313 = vmatprep.subr.mxu0 0.0
  %314 = vmatpush1.msra.mxu0 0.0
  %315 = vmatprep.subr.mxu0 0.0
  %316 = vmatpush1.msra.mxu0 0.0
  %317 = vmatprep.subr.mxu0 0.0
  %318 = vmatpush1.msra.mxu0 0.0
  %319 = vmatprep.subr.mxu0 0.0
  %320 = vmatpush1.msra.mxu0 0.0
  %321 = vmatprep.subr.mxu0 0.0
  %322 = vmatpush1.msra.mxu0 0.0
  %323 = vmatprep.subr.mxu0 0.0
  %324 = vmatpush1.msra.mxu0 0.0
  %325 = vmatprep.subr.mxu0 0.0
  %326 = vmatpush1.msra.mxu0 0.0
  %327 = vmatprep.subr.mxu0 0.0
  %328 = vmatpush1.msra.mxu0 0.0
  %329 = vmatprep.subr.mxu0 0.0
  %330 = vmatpush1.msra.mxu0 0.0
  %331 = vmatprep.subr.mxu0 0.0
  %332 = vmatpush1.msra.mxu0 0.0
  %333 = vmatprep.subr.mxu0 0.0
  %334 = vmatpush1.msra.mxu0 0.0
  %335 = vmatprep.subr.mxu0 0.0
  %336 = vmatpush1.msra.mxu0 0.0
  %337 = vmatprep.mubr.f32.mxu0 0.0
  %338 = vmatmul.mubr.f32.gmra.mrb[0].mxu0 %v271
  %v339 = vpop.f32.mrb[0].mxu0
  %v340 = vadd.f32 %v267, %v339
  %v341 = vpop.f32.mrb[0].mxu0
  %342 = vdwg.mxu0
  %343 = vst [vmem:[%s5] sm:$0x3] %v340
  // Predicated region
  $region22: #{network_forward.1} parent=0 // pred_check
    _
  $region23: #{network_forward.1} parent=0 // pred_check_branch
    %345 = sbr.rel (0) target = $region25
  $region24: #{network_forward.1} parent=0 // pred_region
    _
  $region25: #{network_forward.1} parent=0 // pred_fallthru
    _
  // Predicated region
  $region26: #{network_forward.1} parent=0 // pred_check
    _
  $region27: #{network_forward.1} parent=0 // pred_check_branch
    %347 = sbr.rel (0) target = $region29
  $region28: #{network_forward.1} parent=0 // pred_region
    _
  $region29: #{network_forward.1} parent=0 // pred_fallthru
    _

</llo_original>
